<compile_context>
chip_gen: v7x
topology: tpu7x:2x2x1
jax: 0.10.0
libtpu: 0.0.40
codegen_flags: <defaults>
</compile_context>

<pallas_src>
import functools

import jax
import jax.numpy as jnp
from jax.experimental import pallas as pl
from jax.experimental.pallas import tpu as pltpu

_MIB = 1 << 20


def _vmem_capacity_bytes():
    """Per-core VMEM capacity; conservative 64 MiB (v7x) fallback if the query fails."""
    try:
        info = pltpu.get_tpu_info()
        cap = int(getattr(info, "vmem_capacity_bytes", 0))
        if cap > 0:
            return cap
    except Exception:
        pass
    return 64 * _MIB


def prepare_ffn_mlp_one_params(weight, bias, scale=1.0, param_dtype=None):
    """Hoist per-call work out of the hot path (call once at init).

    PyTorch stores nn.Linear weights as (out, in); the kernel wants (in, out).
    scale*(x @ W^T + b) + x == x @ (scale*W^T) + (scale*b) + x, so a static scale is
    folded into the parameters here and never touches the VPU inside the kernel.
    `param_dtype=jnp.bfloat16` halves weight HBM traffic on bandwidth-starved v5e
    (f32 accumulation is preserved via preferred_element_type in the kernel).
    """
    scale = float(scale)  # must be a static Python number (ctor arg in the module)
    weight_t = jnp.asarray(weight).T
    bias = jnp.asarray(bias)
    if scale != 1.0:
        weight_t = weight_t * scale
        bias = bias * scale
    if param_dtype is not None:
        weight_t = weight_t.astype(param_dtype)
    return weight_t, bias


# --------------------------------------------------------------------------------------
# Kernels
# --------------------------------------------------------------------------------------
def _ffn_kernel_resident(x_ref, w_ref, b_ref, o_ref, *, n_col_tiles):
    """Weight-stationary kernel.  grid=(n_n, n_m): j (column stripe) OUTER, i (row) inner.

    x_ref: (tm, D) native dtype   w_ref: (D, tn) pre-transposed (in, out)
    b_ref: (1, tn)                o_ref: (tm, tn)
    """
    x = x_ref[...]
    # Native-dtype MXU operands; f32 accumulation only via preferred_element_type.
    y = jnp.dot(x, w_ref[...], preferred_element_type=jnp.float32)
    y = y + b_ref[...].astype(jnp.float32)

    if n_col_tiles == 1:
        x_res = x                              # residual columns coincide with the x tile
    else:
        tn = o_ref.shape[-1]                   # lane-aligned ref read of residual columns
        col0 = pl.multiple_of(pl.program_id(0) * tn, tn)
        x_res = x_ref[:, pl.ds(col0, tn)]

    o_ref[...] = (y + x_res.astype(jnp.float32)).astype(o_ref.dtype)


def _ffn_kernel_ktiled(x_ref, w_ref, b_ref, o_ref, acc_ref):
    """K-tiled kernel for D too large for a full-depth weight panel.

    grid=(n_m, n_n, n_k), with tk == tn.
    x_ref: (tm, tk) @ (i, k)   w_ref: (tk, tn) @ (k, j)   b_ref: (1, tn) @ (0, j)
    o_ref: (tm, tn) @ (i, j)   acc_ref: (tm, tn) f32 scratch.
    """
    j = pl.program_id(1)
    k = pl.program_id(2)

    @pl.when(k == 0)
    def _():
        acc_ref[...] = jnp.zeros_like(acc_ref)

    acc_ref[...] += jnp.dot(x_ref[...], w_ref[...], preferred_element_type=jnp.float32)

    # Because tk == tn, the x block at k == j holds exactly this stripe's residual columns.
    @pl.when(k == j)
    def _():
        acc_ref[...] += x_ref[...].astype(jnp.float32)

    @pl.when(k == pl.num_programs(2) - 1)
    def _():
        o_ref[...] = (acc_ref[...] + b_ref[...].astype(jnp.float32)).astype(o_ref.dtype)


# --------------------------------------------------------------------------------------
# Wrapper
# --------------------------------------------------------------------------------------
def ffn_mlp_one(src, weight_t, bias, *, tm=None, tn=None, force_k_tiling=False):
    """src: (..., D);  weight_t: (D, D) already transposed to (in, out) and scale-folded
    (see prepare_ffn_mlp_one_params);  bias: (D,) (scale-folded).  Returns src.shape."""
    orig_shape = src.shape
    D = orig_shape[-1]
    x2d = src.reshape(-1, D)
    M = x2d.shape[0]

    x_isz = jnp.dtype(src.dtype).itemsize
    w_isz = jnp.dtype(weight_t.dtype).itemsize
    o_isz = x_isz

    capacity = _vmem_capacity_bytes()
    work_budget = int(0.55 * capacity)          # headroom for Mosaic internals / semaphores

    tm_given = tm is not None
    tn_given = tn is not None

    # ---- M (row) tile --------------------------------------------------------------
    if not tm_given:
        tm = 512 if M > 512 else M              # big tm amortizes per-step overhead
    tm = max(1, min(tm, M))

    # ---- N / K tile selection under the per-generation VMEM budget ------------------
    def resident_bytes(tm_, tn_):
        w_bufs = 1 if (D * tn_ * w_isz >= _MIB and hasattr(pl, "Buffered")) else 2
        return (w_bufs * D * tn_ * w_isz + 2 * tm_ * D * x_isz
                + 2 * tm_ * tn_ * o_isz + 2 * tn_ * 4)

    def ktiled_bytes(tm_, t):
        return (2 * t * t * w_isz + 2 * tm_ * t * x_isz
                + 2 * tm_ * t * o_isz + tm_ * t * 4 + 2 * t * 4)

    n_cands = [D] + [c for c in (4096, 2048, 1024, 512, 256, 128) if c < D and D % c == 0]
    k_tiled = bool(force_k_tiling) and D % 128 == 0

    if not k_tiled and not tn_given:
        # Maximize tn first (redundant HBM traffic ~ M*D^2/tn), shrinking tm if needed;
        # fall back to K tiling when even a (D, 128) weight panel cannot be resident.
        while True:
            tn = next((c for c in n_cands if resident_bytes(tm, c) <= work_budget), None)
            if tn is not None or tm_given or tm <= 64:
                break
            tm //= 2
        if tn is None:
            if D % 128 == 0:
                k_tiled = True
            else:
                tn = D                          # awkward D: full-extent panel, rely on cap
    if k_tiled and not tn_given:
        tn = next((c for c in (1024, 512, 256, 128)
                   if D % c == 0 and ktiled_bytes(tm, c) <= work_budget), 128)

    assert D % tn == 0, f"tn={tn} must divide D={D}"
    if tn != D:
        assert tn % 128 == 0, "sub-D column tiles must be lane-aligned (multiple of 128)"

    if tm < M:
        tm = max(8, (tm // 8) * 8)              # sublane-aligned unless full-extent
    m_pad = pl.cdiv(M, tm) * tm
    if m_pad != M:                              # padded rows are sliced off below
        x2d = jnp.pad(x2d, ((0, m_pad - M), (0, 0)))

    n_m, n_n = m_pad // tm, D // tn
    b2d = bias.reshape(1, D)
    out_shape = jax.ShapeDtypeStruct((m_pad, D), src.dtype)
    cost = pl.CostEstimate(
        flops=2 * m_pad * D * D + 2 * m_pad * D,
        transcendentals=0,
        bytes_accessed=int(m_pad * D * x_isz + D * D * w_isz + D * 4 + m_pad * D * o_isz))

    if not k_tiled:
        # Weight-stationary: j (column stripe) is the OUTER grid axis, so the weight panel
        # stays resident while the x row tiles stream past it.
        w_index = lambda j, i: (0, j)
        w_bufs = 2
        if D * tn * w_isz >= _MIB and hasattr(pl, "Buffered"):
            try:        # a resident panel never needs a second pipeline buffer
                w_spec = pl.BlockSpec((D, tn), w_index, pipeline_mode=pl.Buffered(1))
                w_bufs = 1
            except TypeError:
                w_spec = pl.BlockSpec((D, tn), w_index)
        else:
            w_spec = pl.BlockSpec((D, tn), w_index)

        need = (w_bufs * D * tn * w_isz + 2 * tm * D * x_isz
                + 2 * tm * tn * o_isz + 2 * tn * 4 + 4 * _MIB)
        vmem_limit = int(min(max(need, 32 * _MIB), int(0.8 * capacity)))

        kernel = functools.partial(_ffn_kernel_resident, n_col_tiles=n_n)
        out2d = pl.pallas_call(
            kernel,
            out_shape=out_shape,
            grid_spec=pltpu.PrefetchScalarGridSpec(
                num_scalar_prefetch=0,
                grid=(n_n, n_m),
                in_specs=[
                    pl.BlockSpec((tm, D), lambda j, i: (i, 0)),   # x row panel (streamed)
                    w_spec,                                       # weight panel (resident)
                    pl.BlockSpec((1, tn), lambda j, i: (0, j)),   # bias slice
                ],
                out_specs=pl.BlockSpec((tm, tn), lambda j, i: (i, j)),
            ),
            compiler_params=pltpu.CompilerParams(
                dimension_semantics=("parallel", "parallel"),
                vmem_limit_bytes=vmem_limit),
            cost_estimate=cost,
        )(x2d, weight_t, b2d)
    else:
        tk = tn   # square K/N tiles: residual columns of stripe j live in x block k == j
        n_k = D // tk
        need = ktiled_bytes(tm, tn) + 4 * _MIB
        vmem_limit = int(min(max(need, 32 * _MIB), int(0.8 * capacity)))

        out2d = pl.pallas_call(
            _ffn_kernel_ktiled,
            out_shape=out_shape,
            grid_spec=pltpu.PrefetchScalarGridSpec(
                num_scalar_prefetch=0,
                grid=(n_m, n_n, n_k),
                in_specs=[
                    pl.BlockSpec((tm, tk), lambda i, j, k: (i, k)),
                    pl.BlockSpec((tk, tn), lambda i, j, k: (k, j)),
                    pl.BlockSpec((1, tn), lambda i, j, k: (0, j)),
                ],
                out_specs=pl.BlockSpec((tm, tn), lambda i, j, k: (i, j)),
                scratch_shapes=[pltpu.VMEM((tm, tn), jnp.float32)],
            ),
            compiler_params=pltpu.CompilerParams(
                dimension_semantics=("parallel", "parallel", "arbitrary"),
                vmem_limit_bytes=vmem_limit),
            cost_estimate=cost,
        )(x2d, weight_t, b2d)

    if m_pad != M:
        out2d = out2d[:M]
    return out2d.reshape(orig_shape)


def _ref(src, weight, bias, scale=1.0):
    # weight in PyTorch (out, in) convention.
    return scale * (jnp.einsum("...i,oi->...o", src, weight) + bias) + src


if __name__ == "__main__":
    key = jax.random.PRNGKey(0)
    k1, k2, k3, k4, k5, k6 = jax.random.split(key, 6)

    # --- Test 1: module-default small shapes, fully automatic tiling (resident path) ---
    batch, seq, feature_dim = 2, 8, 32
    src = jax.random.normal(k1, (batch, seq, feature_dim), dtype=jnp.float32)
    bound = 1.0 / (feature_dim ** 0.5)
    weight = jax.random.uniform(k2, (feature_dim, feature_dim),
                                minval=-bound, maxval=bound, dtype=jnp.float32)
    bias = jax.random.uniform(k3, (feature_dim,),
                              minval=-bound, maxval=bound, dtype=jnp.float32)
    w_t, b_s = prepare_ffn_mlp_one_params(weight, bias, scale=1.0)  # hoisted once at init
    out = jax.block_until_ready(ffn_mlp_one(src, w_t, b_s))
    assert out.shape == src.shape
    assert jnp.allclose(out, _ref(src, weight, bias, 1.0), atol=1e-5, rtol=1e-5)

    # --- Test 2: forced N tiling + scale folding (weight-stationary, n_n > 1) ----------
    B2, S2, D2 = 2, 32, 256
    src2 = jax.random.normal(k4, (B2, S2, D2), dtype=jnp.float32)
    bound2 = 1.0 / (D2 ** 0.5)
    weight2 = jax.random.uniform(k5, (D2, D2), minval=-bound2, maxval=bound2,
                                 dtype=jnp.float32)
    bias2 = jax.random.uniform(k6, (D2,), minval=-bound2, maxval=bound2, dtype=jnp.float32)
    scale2 = 0.5
    w2_t, b2_s = prepare_ffn_mlp_one_params(weight2, bias2, scale=scale2)
    out2 = jax.block_until_ready(ffn_mlp_one(src2, w2_t, b2_s, tm=32, tn=128))
    assert jnp.allclose(out2, _ref(src2, weight2, bias2, scale2), atol=1e-4, rtol=1e-4)

    # --- Test 3: forced K-tiled path (f32 accumulator scratch, pl.when init/finalize) --
    out3 = jax.block_until_ready(
        ffn_mlp_one(src2, w2_t, b2_s, tm=32, tn=128, force_k_tiling=True))
    assert jnp.allclose(out3, _ref(src2, weight2, bias2, scale2), atol=1e-4, rtol=1e-4)

    print("KERNEL_OK")
</pallas_src>

<mosaic_0001>
module attributes {stable_mosaic.version = 11 : i64} {
  func.func @_ffn_kernel_resident(%arg0: i32, %arg1: i32, %arg2: memref<16x32xf32, #tpu.memory_space<vmem>>, %arg3: memref<32x32xf32, #tpu.memory_space<vmem>>, %arg4: memref<1x32xf32, #tpu.memory_space<vmem>>, %arg5: memref<16x32xf32, #tpu.memory_space<vmem>>) attributes {dimension_semantics = [#tpu.dimension_semantics<parallel>, #tpu.dimension_semantics<parallel>], iteration_bounds = array<i64: 1, 1>, scalar_prefetch = 0 : i64, scratch_operands = 0 : i64, tpu.core_type = #tpu.core_type<tc>, window_params = [{transform_indices = @transform_0, window_bounds = array<i64: 16, 32>}, {transform_indices = @transform_1, window_bounds = array<i64: 32, 32>}, {transform_indices = @transform_2, window_bounds = array<i64: 1, 32>}, {transform_indices = @transform_3, window_bounds = array<i64: 16, 32>}]} {
    %c0 = arith.constant 0 : index
    %c0_0 = arith.constant 0 : index
    %0 = vector.load %arg2[%c0, %c0_0] : memref<16x32xf32, #tpu.memory_space<vmem>>, vector<16x32xf32>
    %c0_1 = arith.constant 0 : index
    %c0_2 = arith.constant 0 : index
    %1 = vector.load %arg3[%c0_1, %c0_2] : memref<32x32xf32, #tpu.memory_space<vmem>>, vector<32x32xf32>
    %cst = arith.constant dense<0.000000e+00> : vector<16x32xf32>
    %2 = tpu.matmul %0, %1, %cst {dimension_numbers = #tpu.dot_dimension_numbers<[1], [0], [0], [1], [0, 0, 1, 1], [], []>} : vector<16x32xf32>, vector<32x32xf32>, vector<16x32xf32> -> vector<16x32xf32>
    %c0_3 = arith.constant 0 : index
    %c0_4 = arith.constant 0 : index
    %3 = vector.load %arg4[%c0_3, %c0_4] : memref<1x32xf32, #tpu.memory_space<vmem>>, vector<1x32xf32>
    %4 = vector.broadcast %3 : vector<1x32xf32> to vector<16x32xf32>
    %5 = arith.addf %2, %4 : vector<16x32xf32>
    %6 = arith.addf %5, %0 : vector<16x32xf32>
    %c0_5 = arith.constant 0 : index
    %c0_6 = arith.constant 0 : index
    %7 = vector.load %arg5[%c0_5, %c0_6] : memref<16x32xf32, #tpu.memory_space<vmem>>, vector<16x32xf32>
    tpu.vector_store %arg5[%c0_5, %c0_6], %6 {strides = array<i32>} : memref<16x32xf32, #tpu.memory_space<vmem>>, vector<16x32xf32>,
    return
  }
  func.func @transform_0(%arg0: i32, %arg1: i32) -> (i32, i32) {
    %c0_i32 = arith.constant 0 : i32
    %c0_i32_0 = arith.constant 0 : i32
    return %arg1, %c0_i32 : i32, i32
  }
  func.func @transform_1(%arg0: i32, %arg1: i32) -> (i32, i32) {
    %c0_i32 = arith.constant 0 : i32
    %c0_i32_0 = arith.constant 0 : i32
    return %c0_i32, %arg0 : i32, i32
  }
  func.func @transform_2(%arg0: i32, %arg1: i32) -> (i32, i32) {
    %c0_i32 = arith.constant 0 : i32
    %c0_i32_0 = arith.constant 0 : i32
    return %c0_i32, %arg0 : i32, i32
  }
  func.func @transform_3(%arg0: i32, %arg1: i32) -> (i32, i32) {
    %c0_i32 = arith.constant 0 : i32
    return %arg1, %arg0 : i32, i32
  }
}

</mosaic_0001>

<llo_original>
// kernel: tpu_custom_call.1
$region0: #{tpu_custom_call.1}
  #allocation0 [shape = 'u32[]', space=smem, size = 0x4, offset = 0x4, fixed_abs, tag = 'smem constant byte address 0x4 - core index']
  #allocation1 [shape = 'u32[144,128]{1,0:T(1,128)}', space=vmem, size = 0x12000, scoped, tag = 'internal scratch']
  %s0 = inlined_call_operand.hbm [shape: f32[16,32], index: 0, kind: input, shape index: {}]
  %s1 = inlined_call_operand.hbm [shape: f32[32,32], index: 1, kind: input, shape index: {}]
  %s2 = inlined_call_operand.vmem [shape: f32[1,32], index: 2, kind: input, shape index: {}]
  %s3 = inlined_call_operand.hbm [shape: f32[16,32], index: 3, kind: output, shape index: {}]
  %s4 = sld [smem:[#allocation0]]
  $region30: #{tpu_custom_call.1} parent=0
    _
  %s6 = ssub.s32 1, %s4
  %s7 = scalar_select 0, %s6, %s4
  $region1: #{tpu_custom_call.1} parent=0
    #allocation2 [shape = 'u8[8192]{0}', space=vmem, size = 0x2000, scoped, tag = 'input window, operand 0, single buffered']
    #allocation3 [shape = 's32[1]{0}', space=sflag, size = 0x4, scoped, tag = 'scoped memory for tpu_custom_call.1']
    #allocation4 [shape = 's32[1]{0}', space=sflag, size = 0x4, scoped, tag = 'scoped memory for tpu_custom_call.1']
    #allocation5 [shape = 'u8[16384]{0}', space=vmem, size = 0x4000, scoped, tag = 'input window, operand 1, single buffered']
    #allocation6 [shape = 's32[1]{0}', space=sflag, size = 0x4, scoped, tag = 'scoped memory for tpu_custom_call.1']
    #allocation7 [shape = 'u8[8192]{0}', space=vmem, size = 0x2000, scoped, tag = 'output window, operand 0, single buffered']
    %8 = vsyncpa [#allocation3], 0
    %9 = vsyncpa [#allocation6], 0
    %10 = vsyncpa [#allocation4], 0
    // Predicated region
    $region2: #{tpu_custom_call.1} parent=1 // pred_check
      _
    $region3: #{tpu_custom_call.1} parent=1 // pred_check_branch
      %12 = sbr.rel (0) target = $region5
    $region4: #{tpu_custom_call.1} parent=1 // pred_region
      %s14 = ssub.s32 256, 256
      %15 = vsyncadd [#allocation3], %s14
      %s16 = sshll.u32 [#allocation2], 4
      %s17 = int_to_ptr.vmem [resolvable:$true] %s16
      %22 = dma.hbm_to_vmem [thread:$0]  %s0, 256, %s17, [#allocation3], 128, 128, 8
    $region5: #{tpu_custom_call.1} parent=1 // pred_fallthru
      _
    // Predicated region
    $region6: #{tpu_custom_call.1} parent=1 // pred_check
      _
    $region7: #{tpu_custom_call.1} parent=1 // pred_check_branch
      %24 = sbr.rel (0) target = $region9
    $region8: #{tpu_custom_call.1} parent=1 // pred_region
      %s26 = ssub.s32 512, 512
      %27 = vsyncadd [#allocation6], %s26
      %s28 = sshll.u32 [#allocation5], 4
      %s29 = int_to_ptr.vmem [resolvable:$true] %s28
      %34 = dma.hbm_to_vmem [thread:$0]  %s1, 512, %s29, [#allocation6], 128, 128, 8
    $region9: #{tpu_custom_call.1} parent=1 // pred_fallthru
      _
    // Predicated region
    $region10: #{tpu_custom_call.1} parent=1 // pred_check
      _
    $region11: #{tpu_custom_call.1} parent=1 // pred_check_branch
      %36 = sbr.rel (0) target = $region13
    $region12: #{tpu_custom_call.1} parent=1 // pred_region
      _
    $region13: #{tpu_custom_call.1} parent=1 // pred_fallthru
      _
    // Predicated region
    $region14: #{tpu_custom_call.1} parent=1 // pred_check
      _
    $region15: #{tpu_custom_call.1} parent=1 // pred_check_branch
      %38 = sbr.rel (0) target = $region17
    $region16: #{tpu_custom_call.1} parent=1 // pred_region
      %39 = dma.done [#allocation3], 256
    $region17: #{tpu_custom_call.1} parent=1 // pred_fallthru
      _
    // Predicated region
    $region18: #{tpu_custom_call.1} parent=1 // pred_check
      _
    $region19: #{tpu_custom_call.1} parent=1 // pred_check_branch
      %41 = sbr.rel (0) target = $region21
    $region20: #{tpu_custom_call.1} parent=1 // pred_region
      %42 = dma.done [#allocation6], 512
    $region21: #{tpu_custom_call.1} parent=1 // pred_fallthru
      _
    %v43 = vld [vmem:[#allocation2] sm:$0xff]
    %v44 = vld [vmem:[#allocation2 + $0x8] sm:$0xff]
    %v45 = vld [vmem:[#allocation5] sm:$0xff]
    %v46 = vld [vmem:[#allocation5 + $0x8] sm:$0xff]
    %v47 = vld [vmem:[#allocation5 + $0x10] sm:$0xff]
    %v48 = vld [vmem:[#allocation5 + $0x18] sm:$0xff]
    %v49 = vld [vmem:[%s2] sm:$0x1]
    %v51 = vlaneseq
    %v52 = vshrl.u32 %v51, 7
    %v53 = vsub.s32 0, %v52
    %v54 = vrot.slane %v49, %v53
    %vm56 = vcmask 261120
    %v58 = vsel %vm56, %v43, 0
    %v61 = vsel %vm56, %v44, 0
    %63 = vmatprep.subr.mxu0 0.0
    %64 = vmatpush1.msra.mxu0 %v45
    %65 = vmatprep.subr.mxu0 0.0
    %66 = vmatpush1.msra.mxu0 %v46
    %67 = vmatprep.subr.mxu0 0.0
    %68 = vmatpush1.msra.mxu0 %v47
    %69 = vmatprep.subr.mxu0 0.0
    %70 = vmatpush1.msra.mxu0 %v48
    %71 = vmatprep.subr.mxu0 0.0
    %72 = vmatpush1.msra.mxu0 0.0
    %73 = vmatprep.subr.mxu0 0.0
    %74 = vmatpush1.msra.mxu0 0.0
    %75 = vmatprep.subr.mxu0 0.0
    %76 = vmatpush1.msra.mxu0 0.0
    %77 = vmatprep.subr.mxu0 0.0
    %78 = vmatpush1.msra.mxu0 0.0
    %79 = vmatprep.subr.mxu0 0.0
    %80 = vmatpush1.msra.mxu0 0.0
    %81 = vmatprep.subr.mxu0 0.0
    %82 = vmatpush1.msra.mxu0 0.0
    %83 = vmatprep.subr.mxu0 0.0
    %84 = vmatpush1.msra.mxu0 0.0
    %85 = vmatprep.subr.mxu0 0.0
    %86 = vmatpush1.msra.mxu0 0.0
    %87 = vmatprep.subr.mxu0 0.0
    %88 = vmatpush1.msra.mxu0 0.0
    %89 = vmatprep.subr.mxu0 0.0
    %90 = vmatpush1.msra.mxu0 0.0
    %91 = vmatprep.subr.mxu0 0.0
    %92 = vmatpush1.msra.mxu0 0.0
    %93 = vmatprep.subr.mxu0 0.0
    %94 = vmatpush1.msra.mxu0 0.0
    %95 = vmatprep.subr.mxu0 0.0
    %96 = vmatpush1.msra.mxu0 0.0
    %97 = vmatprep.subr.mxu0 0.0
    %98 = vmatpush1.msra.mxu0 0.0
    %99 = vmatprep.subr.mxu0 0.0
    %100 = vmatpush1.msra.mxu0 0.0
    %101 = vmatprep.subr.mxu0 0.0
    %102 = vmatpush1.msra.mxu0 0.0
    %103 = vmatprep.subr.mxu0 0.0
    %104 = vmatpush1.msra.mxu0 0.0
    %105 = vmatprep.subr.mxu0 0.0
    %106 = vmatpush1.msra.mxu0 0.0
    %107 = vmatprep.subr.mxu0 0.0
    %108 = vmatpush1.msra.mxu0 0.0
    %109 = vmatprep.subr.mxu0 0.0
    %110 = vmatpush1.msra.mxu0 0.0
    %111 = vmatprep.subr.mxu0 0.0
    %112 = vmatpush1.msra.mxu0 0.0
    %113 = vmatprep.subr.mxu0 0.0
    %114 = vmatpush1.msra.mxu0 0.0
    %115 = vmatprep.subr.mxu0 0.0
    %116 = vmatpush1.msra.mxu0 0.0
    %117 = vmatprep.subr.mxu0 0.0
    %118 = vmatpush1.msra.mxu0 0.0
    %119 = vmatprep.subr.mxu0 0.0
    %120 = vmatpush1.msra.mxu0 0.0
    %121 = vmatprep.subr.mxu0 0.0
    %122 = vmatpush1.msra.mxu0 0.0
    %123 = vmatprep.subr.mxu0 0.0
    %124 = vmatpush1.msra.mxu0 0.0
    %125 = vmatprep.subr.mxu0 0.0
    %126 = vmatpush1.msra.mxu0 0.0
    %127 = vmatprep.mubr.f32.mxu0 0.0
    %128 = vmatmul.mubr.f32.gmra.mrb[0].mxu0 %v58
    %v129 = vpop.f32.mrb[0].mxu0
    %v130 = vadd.f32 %v54, %v129
    %v131 = vpop.f32.mrb[0].mxu0
    %132 = vmatprep.mubr.f32.mxu0 0.0
    %133 = vmatmul.mubr.f32.gmra.mrb[0].mxu0 %v61
    %v134 = vpop.f32.mrb[0].mxu0
    %v135 = vadd.f32 %v54, %v134
    %v136 = vpop.f32.mrb[0].mxu0
    %137 = vdwg.mxu0
    %v138 = vadd.f32 %v130, %v43
    %v139 = vadd.f32 %v135, %v44
    %140 = vst.msk [vmem:[#allocation7] sm:$0xff] %vm56, %v138
    %141 = vst.msk [vmem:[#allocation7 + $0x8] sm:$0xff] %vm56, %v139
    // Predicated region
    $region22: #{tpu_custom_call.1} parent=1 // pred_check
      _
    $region23: #{tpu_custom_call.1} parent=1 // pred_check_branch
      %143 = sbr.rel (0) target = $region25
    $region24: #{tpu_custom_call.1} parent=1 // pred_region
      %s145 = ssub.s32 256, 256
      %146 = vsyncadd [#allocation4], %s145
      %s147 = sshll.u32 [#allocation7], 4
      %s148 = int_to_ptr.vmem [resolvable:$true] %s147
      %153 = dma.vmem_to_hbm [thread:$0]  %s148, 256, %s3, [#allocation4], 128, 128, 8
    $region25: #{tpu_custom_call.1} parent=1 // pred_fallthru
      _
    // Predicated region
    $region26: #{tpu_custom_call.1} parent=1 // pred_check
      _
    $region27: #{tpu_custom_call.1} parent=1 // pred_check_branch
      %155 = sbr.rel (0) target = $region29
    $region28: #{tpu_custom_call.1} parent=1 // pred_region
      %156 = dma.done [#allocation4], 256
    $region29: #{tpu_custom_call.1} parent=1 // pred_fallthru
      _
    %157 = vsyncpa [#allocation3], 1
    %158 = vsyncpa [#allocation6], 1
    %159 = vsyncpa [#allocation4], 1

</llo_original>
